<compile_context>
chip_gen: v7x
topology: tpu7x:2x2x1
jax: 0.10.0
libtpu: 0.0.40
codegen_flags: <defaults>
</compile_context>

<pallas_src>
import jax
import jax.numpy as jnp
from jax.experimental import pallas as pl
from jax.experimental.pallas import tpu as pltpu


def _celu(h):
    # CELU with alpha = 1 (PyTorch default): x if x > 0 else exp(x) - 1.
    return jnp.where(h > 0, h, jnp.exp(h) - 1.0)


def _make_kernel(num_layers):
    """Kernel over one batch tile (transposed layout).

    Refs: x_ref [nx, tm], w0_ref [k1, nx], b0_ref [k1, 1],
          (w_i [k_{i+1}, k_i], b_i [k_{i+1}, 1]) for i = 1..num_layers-1,
          o_ref [out_dim, tm].
    """

    def kernel(x_ref, w0_ref, b0_ref, *rest):
        o_ref = rest[-1]
        wb_refs = rest[:-1]

        x = x_ref[...].astype(jnp.float32)                  # (nx, tm)
        nx = x.shape[0]

        # --- layer 0: tiny-K contraction as VPU outer-product FMAs ----------
        # (z is already folded into b0_eff, so this is the whole fc0.)
        h = w0_ref[:, 0:1] * x[0:1, :]                      # (k1, tm)
        for j in range(1, nx):
            h = h + w0_ref[:, j:j + 1] * x[j:j + 1, :]
        h = h + b0_ref[...]                                 # lane-broadcast bias

        # --- layers 1 .. D-1: celu -> MXU matmul (batch on lanes) -> bias ---
        for li in range(1, num_layers):
            w_ref = wb_refs[2 * (li - 1)]
            b_ref = wb_refs[2 * (li - 1) + 1]
            a = _celu(h)
            h = jnp.dot(w_ref[...], a,
                        preferred_element_type=jnp.float32) + b_ref[...]

        o_ref[...] = h.astype(o_ref.dtype)

    return kernel


def _auto_tile(n, cap=1024):
    """Largest batch tile: multiple of 128, divides n, <= cap, preferring a
    grid of >= 2 steps so both v7x TensorCores get work."""
    cands = [t for t in range(128, min(cap, n) + 1, 128) if n % t == 0]
    if not cands:
        raise ValueError(f"batch size {n} must be a multiple of 128")
    two_step = [t for t in cands if n // t >= 2]
    return max(two_step) if two_step else max(cands)


def conditional_general_net_forward(x, z, weights, biases, *, tm=None):
    """x: [bx, nx]; z: [1, nz] (broadcast over the batch, as in the module's
    docstring); weights[i]: [out_i, in_i] (PyTorch layout); biases[i]: [out_i].
    Returns [bx, out_last] float32."""
    bx, nx = x.shape
    nz = z.shape[-1]
    num_layers = len(weights)
    assert num_layers >= 2, "need at least two linear layers (D >= 2)"
    assert weights[0].shape[1] == nx + nz

    # Fold the conditioning vector into the first layer's bias (exact algebra):
    #   fc0([x, z]) = x @ W0x.T + (z @ W0z.T + b0)
    w0 = weights[0].astype(jnp.float32)
    w0x = w0[:, :nx]                                             # [k1, nx]
    b0_eff = (z.astype(jnp.float32) @ w0[:, nx:].T
              + biases[0].astype(jnp.float32)).reshape(-1, 1)    # [k1, 1]

    x_t = x.astype(jnp.float32).T                                # [nx, bx]

    if tm is None:
        tm = _auto_tile(bx)
    assert bx % tm == 0 and tm % 128 == 0
    # TODO(synk): ragged batch sizes (bx % 128 != 0) would need a masked tail tile.

    operands = [x_t, w0x, b0_eff]
    for w, b in zip(weights[1:], biases[1:]):
        operands.append(w.astype(jnp.float32))
        operands.append(b.astype(jnp.float32).reshape(-1, 1))

    # Constant index maps -> weights/biases stay resident in VMEM across steps.
    resident = lambda a: pl.BlockSpec(a.shape, lambda i: (0, 0))
    in_specs = ([pl.BlockSpec((nx, tm), lambda i: (0, i))]
                + [resident(a) for a in operands[1:]])

    out_dim = weights[-1].shape[0]
    out_t = pl.pallas_call(
        _make_kernel(num_layers),
        out_shape=jax.ShapeDtypeStruct((out_dim, bx), jnp.float32),
        grid_spec=pltpu.PrefetchScalarGridSpec(
            num_scalar_prefetch=0,
            grid=(bx // tm,),
            in_specs=in_specs,
            out_specs=pl.BlockSpec((out_dim, tm), lambda i: (0, i)),
        ),
        compiler_params=pltpu.CompilerParams(
            dimension_semantics=("parallel",)),
    )(*operands)

    return out_t.T                                               # [bx, out_dim]


def _reference_forward(x, z, weights, biases):
    """Pure-JAX reference of ConditionalGeneralNet.forward (act = celu)."""
    zb = jnp.broadcast_to(z, (x.shape[0], z.shape[-1]))
    h = jnp.concatenate([x, zb], axis=-1) @ weights[0].T + biases[0]
    for w, b in zip(weights[1:], biases[1:]):
        h = jax.nn.celu(h) @ w.T + b
    return h


if __name__ == "__main__":
    # Module config: ks = [nx + nz, 32, 32, 1]  -> D = 3 linear layers.
    nx, nz = 3, 2
    ks = [nx + nz, 32, 32, 1]
    bx = 512   # batch points; multiple of 128 for lane-dense tiles, 2 grid steps

    key = jax.random.PRNGKey(0)
    key, kx, kz = jax.random.split(key, 3)
    x = jax.random.uniform(kx, (bx, nx), dtype=jnp.float32)
    z = jax.random.normal(kz, (1, nz), dtype=jnp.float32)

    # Deterministic nn.Linear-style init (Kaiming-uniform-ish), PyTorch layout.
    weights, biases = [], []
    for fan_in, fan_out in zip(ks[:-1], ks[1:]):
        key, kw, kb = jax.random.split(key, 3)
        bound = 1.0 / jnp.sqrt(fan_in)
        weights.append(jax.random.uniform(kw, (fan_out, fan_in), jnp.float32,
                                          -bound, bound))
        biases.append(jax.random.uniform(kb, (fan_out,), jnp.float32,
                                         -bound, bound))

    fwd = jax.jit(conditional_general_net_forward)
    out = fwd(x, z, weights, biases)
    jax.block_until_ready(out)

    ref = _reference_forward(x, z, weights, biases)
    assert out.shape == (bx, ks[-1])
    assert jnp.allclose(out, ref, atol=1e-5, rtol=1e-5), (
        "max abs err: %e" % float(jnp.max(jnp.abs(out - ref))))

    print("KERNEL_OK")
</pallas_src>

<mosaic_0001>
module attributes {stable_mosaic.version = 11 : i64} {
  func.func @kernel(%arg0: i32, %arg1: memref<3x256xf32, #tpu.memory_space<vmem>>, %arg2: memref<32x3xf32, #tpu.memory_space<vmem>>, %arg3: memref<32x1xf32, #tpu.memory_space<vmem>>, %arg4: memref<32x32xf32, #tpu.memory_space<vmem>>, %arg5: memref<32x1xf32, #tpu.memory_space<vmem>>, %arg6: memref<1x32xf32, #tpu.memory_space<vmem>>, %arg7: memref<1x1xf32, #tpu.memory_space<vmem>>, %arg8: memref<1x256xf32, #tpu.memory_space<vmem>>) attributes {dimension_semantics = [#tpu.dimension_semantics<parallel>], iteration_bounds = array<i64: 2>, scalar_prefetch = 0 : i64, scratch_operands = 0 : i64, tpu.core_type = #tpu.core_type<tc>, window_params = [{transform_indices = @transform_0, window_bounds = array<i64: 3, 256>}, {pipeline_mode = #tpu.pipeline_mode<synchronous>, transform_indices = @transform_1, window_bounds = array<i64: 32, 3>}, {pipeline_mode = #tpu.pipeline_mode<synchronous>, transform_indices = @transform_2, window_bounds = array<i64: 32, 1>}, {pipeline_mode = #tpu.pipeline_mode<synchronous>, transform_indices = @transform_3, window_bounds = array<i64: 32, 32>}, {pipeline_mode = #tpu.pipeline_mode<synchronous>, transform_indices = @transform_4, window_bounds = array<i64: 32, 1>}, {pipeline_mode = #tpu.pipeline_mode<synchronous>, transform_indices = @transform_5, window_bounds = array<i64: 1, 32>}, {pipeline_mode = #tpu.pipeline_mode<synchronous>, transform_indices = @transform_6, window_bounds = array<i64: 1, 1>}, {transform_indices = @transform_7, window_bounds = array<i64: 1, 256>}]} {
    %c0 = arith.constant 0 : index
    %c0_0 = arith.constant 0 : index
    %0 = vector.load %arg1[%c0, %c0_0] : memref<3x256xf32, #tpu.memory_space<vmem>>, vector<3x256xf32>
    %c0_1 = arith.constant 0 : index
    %c0_2 = arith.constant 0 : index
    %1 = vector.load %arg2[%c0_1, %c0_2] : memref<32x3xf32, #tpu.memory_space<vmem>>, vector<32x1xf32>
    %2 = vector.extract_strided_slice %0 {offsets = [0, 0], sizes = [1, 256], strides = [1, 1]} : vector<3x256xf32> to vector<1x256xf32>
    %3 = vector.broadcast %1 : vector<32x1xf32> to vector<32x256xf32>
    %4 = vector.broadcast %2 : vector<1x256xf32> to vector<32x256xf32>
    %5 = arith.mulf %3, %4 : vector<32x256xf32>
    %c0_3 = arith.constant 0 : index
    %c1 = arith.constant 1 : index
    %6 = vector.load %arg2[%c0_3, %c1] : memref<32x3xf32, #tpu.memory_space<vmem>>, vector<32x1xf32>
    %7 = vector.extract_strided_slice %0 {offsets = [1, 0], sizes = [1, 256], strides = [1, 1]} : vector<3x256xf32> to vector<1x256xf32>
    %8 = vector.broadcast %6 : vector<32x1xf32> to vector<32x256xf32>
    %9 = vector.broadcast %7 : vector<1x256xf32> to vector<32x256xf32>
    %10 = arith.mulf %8, %9 : vector<32x256xf32>
    %11 = arith.addf %5, %10 : vector<32x256xf32>
    %c0_4 = arith.constant 0 : index
    %c2 = arith.constant 2 : index
    %12 = vector.load %arg2[%c0_4, %c2] : memref<32x3xf32, #tpu.memory_space<vmem>>, vector<32x1xf32>
    %13 = vector.extract_strided_slice %0 {offsets = [2, 0], sizes = [1, 256], strides = [1, 1]} : vector<3x256xf32> to vector<1x256xf32>
    %14 = vector.broadcast %12 : vector<32x1xf32> to vector<32x256xf32>
    %15 = vector.broadcast %13 : vector<1x256xf32> to vector<32x256xf32>
    %16 = arith.mulf %14, %15 : vector<32x256xf32>
    %17 = arith.addf %11, %16 : vector<32x256xf32>
    %c0_5 = arith.constant 0 : index
    %c0_6 = arith.constant 0 : index
    %18 = vector.load %arg3[%c0_5, %c0_6] : memref<32x1xf32, #tpu.memory_space<vmem>>, vector<32x1xf32>
    %19 = vector.broadcast %18 : vector<32x1xf32> to vector<32x256xf32>
    %20 = arith.addf %17, %19 : vector<32x256xf32>
    %cst = arith.constant 0.000000e+00 : f32
    %21 = vector.broadcast %cst : f32 to vector<32x256xf32>
    %22 = arith.cmpf ogt, %20, %21 : vector<32x256xf32>
    %23 = math.exp %20 : vector<32x256xf32>
    %cst_7 = arith.constant 1.000000e+00 : f32
    %24 = vector.broadcast %cst_7 : f32 to vector<32x256xf32>
    %25 = arith.subf %23, %24 : vector<32x256xf32>
    %26 = arith.select %22, %20, %25 : vector<32x256xi1>, vector<32x256xf32>
    %c0_8 = arith.constant 0 : index
    %c0_9 = arith.constant 0 : index
    %27 = vector.load %arg4[%c0_8, %c0_9] : memref<32x32xf32, #tpu.memory_space<vmem>>, vector<32x32xf32>
    %cst_10 = arith.constant dense<0.000000e+00> : vector<32x256xf32>
    %28 = tpu.matmul %27, %26, %cst_10 {dimension_numbers = #tpu.dot_dimension_numbers<[1], [0], [0], [1], [0, 0, 1, 1], [], []>} : vector<32x32xf32>, vector<32x256xf32>, vector<32x256xf32> -> vector<32x256xf32>
    %c0_11 = arith.constant 0 : index
    %c0_12 = arith.constant 0 : index
    %29 = vector.load %arg5[%c0_11, %c0_12] : memref<32x1xf32, #tpu.memory_space<vmem>>, vector<32x1xf32>
    %30 = vector.broadcast %29 : vector<32x1xf32> to vector<32x256xf32>
    %31 = arith.addf %28, %30 : vector<32x256xf32>
    %cst_13 = arith.constant 0.000000e+00 : f32
    %32 = vector.broadcast %cst_13 : f32 to vector<32x256xf32>
    %33 = arith.cmpf ogt, %31, %32 : vector<32x256xf32>
    %34 = math.exp %31 : vector<32x256xf32>
    %cst_14 = arith.constant 1.000000e+00 : f32
    %35 = vector.broadcast %cst_14 : f32 to vector<32x256xf32>
    %36 = arith.subf %34, %35 : vector<32x256xf32>
    %37 = arith.select %33, %31, %36 : vector<32x256xi1>, vector<32x256xf32>
    %c0_15 = arith.constant 0 : index
    %c0_16 = arith.constant 0 : index
    %38 = vector.load %arg6[%c0_15, %c0_16] : memref<1x32xf32, #tpu.memory_space<vmem>>, vector<1x32xf32>
    %cst_17 = arith.constant dense<0.000000e+00> : vector<1x256xf32>
    %39 = tpu.matmul %38, %37, %cst_17 {dimension_numbers = #tpu.dot_dimension_numbers<[1], [0], [0], [1], [0, 0, 1, 1], [], []>} : vector<1x32xf32>, vector<32x256xf32>, vector<1x256xf32> -> vector<1x256xf32>
    %c0_18 = arith.constant 0 : index
    %c0_19 = arith.constant 0 : index
    %40 = vector.load %arg7[%c0_18, %c0_19] : memref<1x1xf32, #tpu.memory_space<vmem>>, vector<1x1xf32>
    %41 = vector.broadcast %40 : vector<1x1xf32> to vector<1x256xf32>
    %42 = arith.addf %39, %41 : vector<1x256xf32>
    %c0_20 = arith.constant 0 : index
    %c0_21 = arith.constant 0 : index
    %43 = vector.load %arg8[%c0_20, %c0_21] : memref<1x256xf32, #tpu.memory_space<vmem>>, vector<1x256xf32>
    tpu.vector_store %arg8[%c0_20, %c0_21], %42 {strides = array<i32>} : memref<1x256xf32, #tpu.memory_space<vmem>>, vector<1x256xf32>,
    return
  }
  func.func @transform_0(%arg0: i32) -> (i32, i32) {
    %c0_i32 = arith.constant 0 : i32
    %c0_i32_0 = arith.constant 0 : i32
    return %c0_i32, %arg0 : i32, i32
  }
  func.func @transform_1(%arg0: i32) -> (i32, i32) {
    %c0_i32 = arith.constant 0 : i32
    %c0_i32_0 = arith.constant 0 : i32
    %c0_i32_1 = arith.constant 0 : i32
    return %c0_i32, %c0_i32_0 : i32, i32
  }
  func.func @transform_2(%arg0: i32) -> (i32, i32) {
    %c0_i32 = arith.constant 0 : i32
    %c0_i32_0 = arith.constant 0 : i32
    %c0_i32_1 = arith.constant 0 : i32
    return %c0_i32, %c0_i32_0 : i32, i32
  }
  func.func @transform_3(%arg0: i32) -> (i32, i32) {
    %c0_i32 = arith.constant 0 : i32
    %c0_i32_0 = arith.constant 0 : i32
    %c0_i32_1 = arith.constant 0 : i32
    return %c0_i32, %c0_i32_0 : i32, i32
  }
  func.func @transform_4(%arg0: i32) -> (i32, i32) {
    %c0_i32 = arith.constant 0 : i32
    %c0_i32_0 = arith.constant 0 : i32
    %c0_i32_1 = arith.constant 0 : i32
    return %c0_i32, %c0_i32_0 : i32, i32
  }
  func.func @transform_5(%arg0: i32) -> (i32, i32) {
    %c0_i32 = arith.constant 0 : i32
    %c0_i32_0 = arith.constant 0 : i32
    %c0_i32_1 = arith.constant 0 : i32
    return %c0_i32, %c0_i32_0 : i32, i32
  }
  func.func @transform_6(%arg0: i32) -> (i32, i32) {
    %c0_i32 = arith.constant 0 : i32
    %c0_i32_0 = arith.constant 0 : i32
    %c0_i32_1 = arith.constant 0 : i32
    return %c0_i32, %c0_i32_0 : i32, i32
  }
  func.func @transform_7(%arg0: i32) -> (i32, i32) {
    %c0_i32 = arith.constant 0 : i32
    %c0_i32_0 = arith.constant 0 : i32
    return %c0_i32, %arg0 : i32, i32
  }
}

</mosaic_0001>

<llo_original>
// kernel: conditional_general_net_forward.1
$region0: #{conditional_general_net_forward.1}
  #allocation0 [shape = 'u32[]', space=smem, size = 0x4, offset = 0x4, fixed_abs, tag = 'smem constant byte address 0x4 - core index']
  #allocation1 [shape = 'u32[144,128]{1,0:T(1,128)}', space=vmem, size = 0x12000, scoped, tag = 'internal scratch']
  #allocation2 [shape = 'f32[1,1]{1,0:T(1,128)S(1)}', space=vmem, size = 0x200, scoped, tag = 'scoped memory for conditional_general_net_forward.1']
  %s0 = inlined_call_operand.vmem [shape: f32[3,512], index: 0, kind: input, shape index: {}]
  %s1 = inlined_call_operand.vmem [shape: f32[32,3], index: 1, kind: input, shape index: {}]
  %s2 = inlined_call_operand.vmem [shape: f32[32,1], index: 2, kind: input, shape index: {}]
  %s3 = inlined_call_operand.vmem [shape: f32[32,32], index: 3, kind: input, shape index: {}]
  %s4 = inlined_call_operand.vmem [shape: f32[32,1], index: 4, kind: input, shape index: {}]
  %s5 = inlined_call_operand.vmem [shape: f32[1,32], index: 5, kind: input, shape index: {}]
  %s6 = inlined_call_operand.<no memory space> [shape: f32[1,1], index: 6, kind: input, shape index: {}]
  %s7 = inlined_call_operand.hbm [shape: f32[1,512], index: 7, kind: output, shape index: {}]
  %s8 = sld [smem:[#allocation0]]
  $region61: #{conditional_general_net_forward.1} parent=0
    _
  %s10 = ssub.s32 1, %s8
  %s11 = scalar_select 0, %s10, %s8
  %v12 = vstv %s6
  %13 = vst [vmem:[#allocation2] sm:$0x1] %v12
  $region1: #{conditional_general_net_forward.1} parent=0
    #allocation3 [shape = 'u8[2048]{0}', space=vmem, size = 0x800, scoped, tag = 'output window, operand 0']
    #allocation4 [shape = 's32[2]{0}', space=sflag, size = 0x8, scoped, tag = 'scoped memory for conditional_general_net_forward.1']
    %14 = vsyncpa [#allocation4], 0
    %s15 = scalar_lea.sflag [#allocation4], 1
    %16 = vsyncpa %s15, 0
    loop: start=0, step=1, limit=4
    $region2: #{conditional_general_net_forward.1} parent=1 // loop_pre_header
      _
    $region3: #{conditional_general_net_forward.1} parent=1 // loop_header
      %s18 = sphi 0, %s22
      %p19 = scmp.ge.s32.totalorder %s18, 4
      %s28 = sphi 0, %s30
      %s31 = sphi 0, %s28
      %s32 = sphi 0, %s31
      %s48 = sphi 0, %s32
      %s52 = sphi 0, %s52
      %s54 = sphi 0, %s52
      %s55 = sphi 0, %s54
      %s69 = sphi 0, %s55
      %s73 = sphi 0, %s73
      %s75 = sphi 0, %s73
      %s76 = sphi 0, %s75
      %s90 = sphi 0, %s76
      %s94 = sphi 0, %s94
      %s96 = sphi 0, %s94
      %s97 = sphi 0, %s96
      %s111 = sphi 0, %s97
      %s115 = sphi 0, %s115
      %s117 = sphi 0, %s115
      %s118 = sphi 0, %s117
      %s132 = sphi 0, %s118
      %s136 = sphi 0, %s136
      %s138 = sphi 0, %s136
      %s139 = sphi 0, %s138
      %s153 = sphi 0, %s139
      %s157 = sphi 0, %s157
      %s159 = sphi 0, %s157
      %s160 = sphi 0, %s159
      %s174 = sphi 0, %s160
      %s180 = sphi 0, %s182
      %s183 = sphi 0, %s180
      %s184 = sphi 0, %s183
      %s200 = sphi 0, %s184
    $region4: #{conditional_general_net_forward.1} parent=1 // loop_header_branch
      %21 = sbr.rel (%p19) target = $region8
    $region5: #{conditional_general_net_forward.1} parent=1 // loop_body
      %s23 = ssub.s32 %s18, 1
      %s24 = ssub.s32 %s18, 2
      %s25 = sadd.s32 %s18, 1
      %s26 = ssub.s32 %s18, %s25
      %p27 = scmp.eq.s32.totalorder %s26, 0
      %s29 = sadd.s32 %s28, 1
      %s30 = scalar_select %p27, %s28, %s29
      %p33 = pneg %p27
      %p34 = scmp.eq.s32.totalorder %s18, 1
      %p35 = por %p33, %p34
      %p36 = scmp.ne.s32.totalorder %s28, %s31
      %p37 = scmp.eq.s32.totalorder %s18, 0
      %p38 = por %p36, %p37
      %p39 = scmp.ne.s32.totalorder %s28, %s31
      %p40 = scmp.eq.s32.totalorder %s23, 1
      %p41 = por %p39, %p40
      %p42 = scmp.ne.s32.totalorder %s31, %s32
      %p43 = scmp.eq.s32.totalorder %s23, 0
      %p44 = por %p42, %p43
      %p45 = scmp.ne.s32.totalorder %s31, %s32
      %p46 = scmp.eq.s32.totalorder %s24, 1
      %p47 = por %p45, %p46
      %p49 = scmp.ne.s32.totalorder %s32, %s48
      %p50 = scmp.eq.s32.totalorder %s24, 0
      %p51 = por %p49, %p50
      %s53 = sadd.s32 %s52, 1
      %p56 = scmp.eq.s32.totalorder %s18, 1
      %p57 = scmp.ne.s32.totalorder %s52, %s54
      %p58 = scmp.eq.s32.totalorder %s18, 0
      %p59 = por %p57, %p58
      %p60 = scmp.ne.s32.totalorder %s52, %s54
      %p61 = scmp.eq.s32.totalorder %s23, 1
      %p62 = por %p60, %p61
      %p63 = scmp.ne.s32.totalorder %s54, %s55
      %p64 = scmp.eq.s32.totalorder %s23, 0
      %p65 = por %p63, %p64
      %p66 = scmp.ne.s32.totalorder %s54, %s55
      %p67 = scmp.eq.s32.totalorder %s24, 1
      %p68 = por %p66, %p67
      %p70 = scmp.ne.s32.totalorder %s55, %s69
      %p71 = scmp.eq.s32.totalorder %s24, 0
      %p72 = por %p70, %p71
      %s74 = sadd.s32 %s73, 1
      %p77 = scmp.eq.s32.totalorder %s18, 1
      %p78 = scmp.ne.s32.totalorder %s73, %s75
      %p79 = scmp.eq.s32.totalorder %s18, 0
      %p80 = por %p78, %p79
      %p81 = scmp.ne.s32.totalorder %s73, %s75
      %p82 = scmp.eq.s32.totalorder %s23, 1
      %p83 = por %p81, %p82
      %p84 = scmp.ne.s32.totalorder %s75, %s76
      %p85 = scmp.eq.s32.totalorder %s23, 0
      %p86 = por %p84, %p85
      %p87 = scmp.ne.s32.totalorder %s75, %s76
      %p88 = scmp.eq.s32.totalorder %s24, 1
      %p89 = por %p87, %p88
      %p91 = scmp.ne.s32.totalorder %s76, %s90
      %p92 = scmp.eq.s32.totalorder %s24, 0
      %p93 = por %p91, %p92
      %s95 = sadd.s32 %s94, 1
      %p98 = scmp.eq.s32.totalorder %s18, 1
      %p99 = scmp.ne.s32.totalorder %s94, %s96
      %p100 = scmp.eq.s32.totalorder %s18, 0
      %p101 = por %p99, %p100
      %p102 = scmp.ne.s32.totalorder %s94, %s96
      %p103 = scmp.eq.s32.totalorder %s23, 1
      %p104 = por %p102, %p103
      %p105 = scmp.ne.s32.totalorder %s96, %s97
      %p106 = scmp.eq.s32.totalorder %s23, 0
      %p107 = por %p105, %p106
      %p108 = scmp.ne.s32.totalorder %s96, %s97
      %p109 = scmp.eq.s32.totalorder %s24, 1
      %p110 = por %p108, %p109
      %p112 = scmp.ne.s32.totalorder %s97, %s111
      %p113 = scmp.eq.s32.totalorder %s24, 0
      %p114 = por %p112, %p113
      %s116 = sadd.s32 %s115, 1
      %p119 = scmp.eq.s32.totalorder %s18, 1
      %p120 = scmp.ne.s32.totalorder %s115, %s117
      %p121 = scmp.eq.s32.totalorder %s18, 0
      %p122 = por %p120, %p121
      %p123 = scmp.ne.s32.totalorder %s115, %s117
      %p124 = scmp.eq.s32.totalorder %s23, 1
      %p125 = por %p123, %p124
      %p126 = scmp.ne.s32.totalorder %s117, %s118
      %p127 = scmp.eq.s32.totalorder %s23, 0
      %p128 = por %p126, %p127
      %p129 = scmp.ne.s32.totalorder %s117, %s118
      %p130 = scmp.eq.s32.totalorder %s24, 1
      %p131 = por %p129, %p130
      %p133 = scmp.ne.s32.totalorder %s118, %s132
      %p134 = scmp.eq.s32.totalorder %s24, 0
      %p135 = por %p133, %p134
      %s137 = sadd.s32 %s136, 1
      %p140 = scmp.eq.s32.totalorder %s18, 1
      %p141 = scmp.ne.s32.totalorder %s136, %s138
      %p142 = scmp.eq.s32.totalorder %s18, 0
      %p143 = por %p141, %p142
      %p144 = scmp.ne.s32.totalorder %s136, %s138
      %p145 = scmp.eq.s32.totalorder %s23, 1
      %p146 = por %p144, %p145
      %p147 = scmp.ne.s32.totalorder %s138, %s139
      %p148 = scmp.eq.s32.totalorder %s23, 0
      %p149 = por %p147, %p148
      %p150 = scmp.ne.s32.totalorder %s138, %s139
      %p151 = scmp.eq.s32.totalorder %s24, 1
      %p152 = por %p150, %p151
      %p154 = scmp.ne.s32.totalorder %s139, %s153
      %p155 = scmp.eq.s32.totalorder %s24, 0
      %p156 = por %p154, %p155
      %s158 = sadd.s32 %s157, 1
      %p161 = scmp.eq.s32.totalorder %s18, 1
      %p162 = scmp.ne.s32.totalorder %s157, %s159
      %p163 = scmp.eq.s32.totalorder %s18, 0
      %p164 = por %p162, %p163
      %p165 = scmp.ne.s32.totalorder %s157, %s159
      %p166 = scmp.eq.s32.totalorder %s23, 1
      %p167 = por %p165, %p166
      %p168 = scmp.ne.s32.totalorder %s159, %s160
      %p169 = scmp.eq.s32.totalorder %s23, 0
      %p170 = por %p168, %p169
      %p171 = scmp.ne.s32.totalorder %s159, %s160
      %p172 = scmp.eq.s32.totalorder %s24, 1
      %p173 = por %p171, %p172
      %p175 = scmp.ne.s32.totalorder %s160, %s174
      %p176 = scmp.eq.s32.totalorder %s24, 0
      %p177 = por %p175, %p176
      %s178 = ssub.s32 %s18, %s25
      %p179 = scmp.eq.s32.totalorder %s178, 0
      %s181 = sadd.s32 %s180, 1
      %s182 = scalar_select %p179, %s180, %s181
      %p185 = pneg %p179
      %p186 = scmp.eq.s32.totalorder %s18, 1
      %p187 = por %p185, %p186
      %p188 = scmp.ne.s32.totalorder %s180, %s183
      %p189 = scmp.eq.s32.totalorder %s18, 0
      %p190 = por %p188, %p189
      %p191 = scmp.ne.s32.totalorder %s180, %s183
      %p192 = scmp.eq.s32.totalorder %s23, 1
      %p193 = por %p191, %p192
      %p194 = scmp.ne.s32.totalorder %s183, %s184
      %p195 = scmp.eq.s32.totalorder %s23, 0
      %p196 = por %p194, %p195
      %p197 = scmp.ne.s32.totalorder %s183, %s184
      %p198 = scmp.eq.s32.totalorder %s24, 1
      %p199 = por %p197, %p198
      %p201 = scmp.ne.s32.totalorder %s184, %s200
      %p202 = scmp.eq.s32.totalorder %s24, 0
      %p203 = por %p201, %p202
      %p204 = scmp.le.s32.totalorder 1, %s18
      %p205 = scmp.lt.s32.totalorder %s18, 3
      %p206 = pnand %p204, %p205
      %p207 = pneg %p206
      // Predicated region
      $region9: #{conditional_general_net_forward.1} parent=5 // pred_check
        _
      $region10: #{conditional_general_net_forward.1} parent=5 // pred_check_branch
        %209 = sbr.rel (%p206) target = $region12
      $region11: #{conditional_general_net_forward.1} parent=5 // pred_region
        %s210 = ssub.s32 %s18, 1
        // Predicated region
        $region13: #{conditional_general_net_forward.1} parent=11 // pred_check
          %p211 = pneg %p65
        $region14: #{conditional_general_net_forward.1} parent=11 // pred_check_branch
          %213 = sbr.rel (%p211) target = $region16
        $region15: #{conditional_general_net_forward.1} parent=11 // pred_region
          _
        $region16: #{conditional_general_net_forward.1} parent=11 // pred_fallthru
          _
        // Predicated region
        $region17: #{conditional_general_net_forward.1} parent=11 // pred_check
          %p214 = pneg %p86
        $region18: #{conditional_general_net_forward.1} parent=11 // pred_check_branch
          %216 = sbr.rel (%p214) target = $region20
        $region19: #{conditional_general_net_forward.1} parent=11 // pred_region
          _
        $region20: #{conditional_general_net_forward.1} parent=11 // pred_fallthru
          _
        // Predicated region
        $region21: #{conditional_general_net_forward.1} parent=11 // pred_check
          %p217 = pneg %p107
        $region22: #{conditional_general_net_forward.1} parent=11 // pred_check_branch
          %219 = sbr.rel (%p217) target = $region24
        $region23: #{conditional_general_net_forward.1} parent=11 // pred_region
          _
        $region24: #{conditional_general_net_forward.1} parent=11 // pred_fallthru
          _
        // Predicated region
        $region25: #{conditional_general_net_forward.1} parent=11 // pred_check
          %p220 = pneg %p128
        $region26: #{conditional_general_net_forward.1} parent=11 // pred_check_branch
          %222 = sbr.rel (%p220) target = $region28
        $region27: #{conditional_general_net_forward.1} parent=11 // pred_region
          _
        $region28: #{conditional_general_net_forward.1} parent=11 // pred_fallthru
          _
        // Predicated region
        $region29: #{conditional_general_net_forward.1} parent=11 // pred_check
          %p223 = pneg %p149
        $region30: #{conditional_general_net_forward.1} parent=11 // pred_check_branch
          %225 = sbr.rel (%p223) target = $region32
        $region31: #{conditional_general_net_forward.1} parent=11 // pred_region
          _
        $region32: #{conditional_general_net_forward.1} parent=11 // pred_fallthru
          _
        // Predicated region
        $region33: #{conditional_general_net_forward.1} parent=11 // pred_check
          %p226 = pneg %p170
        $region34: #{conditional_general_net_forward.1} parent=11 // pred_check_branch
          %228 = sbr.rel (%p226) target = $region36
        $region35: #{conditional_general_net_forward.1} parent=11 // pred_region
          _
        $region36: #{conditional_general_net_forward.1} parent=11 // pred_fallthru
          _
      $region12: #{conditional_general_net_forward.1} parent=5 // pred_fallthru
        _
      %p229 = scmp.lt.s32.totalorder %s18, 2
      // Predicated region
      $region37: #{conditional_general_net_forward.1} parent=5 // pred_check
        %p230 = pneg %p229
      $region38: #{conditional_general_net_forward.1} parent=5 // pred_check_branch
        %232 = sbr.rel (%p230) target = $region40
      $region39: #{conditional_general_net_forward.1} parent=5 // pred_region
        // Predicated region
        $region41: #{conditional_general_net_forward.1} parent=39 // pred_check
          %p233 = pneg %p38
        $region42: #{conditional_general_net_forward.1} parent=39 // pred_check_branch
          %235 = sbr.rel (%p233) target = $region44
        $region43: #{conditional_general_net_forward.1} parent=39 // pred_region
          %s236 = smul.u32 2, %s18
          %p237 = scmp.lt.s32.totalorder %s236, 3
          %s238 = scalar_select %p237, %s236, 3
          %s239 = smul.addr %s238, 4
          %s240 = scalar_lea.vmem %s0, %s239
          %s241 = smul.u32 2, %s18
        $region44: #{conditional_general_net_forward.1} parent=39 // pred_fallthru
          _
      $region40: #{conditional_general_net_forward.1} parent=5 // pred_fallthru
        _
      %p242 = scmp.le.s32.totalorder 1, %s18
      %p243 = scmp.lt.s32.totalorder %s18, 3
      %p244 = pnand %p242, %p243
      %p245 = pneg %p244
      // Predicated region
      $region45: #{conditional_general_net_forward.1} parent=5 // pred_check
        _
      $region46: #{conditional_general_net_forward.1} parent=5 // pred_check_branch
        %247 = sbr.rel (%p244) target = $region48
      $region47: #{conditional_general_net_forward.1} parent=5 // pred_region
        %s248 = ssub.s32 %s18, 1
        %s249 = smul.u32 2, %s23
        %p250 = scmp.lt.s32.totalorder %s249, 3
        %s251 = scalar_select %p250, %s249, 3
        %s252 = smul.addr %s251, 4
        %s253 = scalar_lea.vmem %s0, %s252
        %p254 = pneg %p44
        %p255 = pneg %p41
        %p256 = pneg %p65
        %p257 = pneg %p62
        %p258 = pneg %p86
        %p259 = pneg %p83
        %p260 = pneg %p107
        %p261 = pneg %p104
        %p262 = pneg %p128
        %p263 = pneg %p125
        %p264 = pneg %p149
        %p265 = pneg %p146
        %p266 = pneg %p170
        %p267 = pneg %p167
        %p268 = pneg %p196
        %p269 = pneg %p193
        %s270 = sand.u32 %s183, 1
        %s271 = scalar_lea.sflag [#allocation4], %s270
        %s272 = sand.u32 %s183, 1
        %s273 = smul.addr %s272, 2
        %s274 = scalar_lea.vmem [#allocation3], %s273
        %s275 = smul.u32 2, %s23
        %p276 = scmp.lt.s32.totalorder %s275, 3
        %s277 = scalar_select %p276, %s275, 3
        %s278 = smul.addr %s277, 4
        %s279 = scalar_lea.vmem %s0, %s278
        %s280 = smul.u32 2, %s23
        %s281 = smul.u32 2, %s23
        %v282 = vld [vmem:[%s279] sm:$0x77]
        %v283 = vld [vmem:[%s1] sm:$0xff]
        %v284 = vld [vmem:[%s1 + $0x8] sm:$0xff]
        %v285 = vld [vmem:[%s1 + $0x10] sm:$0xff]
        %v286 = vld [vmem:[%s1 + $0x18] sm:$0xff]
        %288 = vset.pattern.permute.xlu0 0
        %289 = vperm.xlu0 %288, %v283
        %v290 = vpop.permute.xlu0 %289
        %293 = vset.pattern.permute.xlu0 0
        %294 = vperm.xlu0 %293, %v284
        %v295 = vpop.permute.xlu0 %294
        %298 = vset.pattern.permute.xlu0 0
        %299 = vperm.xlu0 %298, %v285
        %v300 = vpop.permute.xlu0 %299
        %303 = vset.pattern.permute.xlu0 0
        %304 = vperm.xlu0 %303, %v286
        %v305 = vpop.permute.xlu0 %304
        %v308 = vlaneseq
        %v309 = vshrl.u32 %v308, 7
        %v310 = vsub.s32 0, %v309
        %v311 = vrot.slane %v282, %v310
        %v312 = vlaneseq
        %v313 = vshrl.u32 %v312, 7
        %v314 = vsub.s32 4, %v313
        %v315 = vrot.slane %v282, %v314
        %v318 = vlaneseq
        %v319 = vshrl.u32 %v318, 7
        %v320 = vsub.s32 0, %v319
        %v321 = vrot.slane %v311, %v320
        %v322 = vlaneseq
        %v323 = vshrl.u32 %v322, 7
        %v324 = vsub.s32 0, %v323
        %v325 = vrot.slane %v315, %v324
        %v326 = vmul.f32 %v290, %v321
        %v327 = vmul.f32 %v290, %v325
        %v328 = vmul.f32 %v295, %v321
        %v329 = vmul.f32 %v295, %v325
        %v330 = vmul.f32 %v300, %v321
        %v331 = vmul.f32 %v300, %v325
        %v332 = vmul.f32 %v305, %v321
        %v333 = vmul.f32 %v305, %v325
        %334 = vset.pattern.permute.xlu0 1
        %335 = vperm.xlu0 %334, %v283
        %v336 = vpop.permute.xlu0 %335
        %338 = vset.pattern.permute.xlu0 1
        %339 = vperm.xlu0 %338, %v284
        %v340 = vpop.permute.xlu0 %339
        %342 = vset.pattern.permute.xlu0 1
        %343 = vperm.xlu0 %342, %v285
        %v344 = vpop.permute.xlu0 %343
        %346 = vset.pattern.permute.xlu0 1
        %347 = vperm.xlu0 %346, %v286
        %v348 = vpop.permute.xlu0 %347
        %v350 = vlaneseq
        %v351 = vshrl.u32 %v350, 7
        %v352 = vsub.s32 1, %v351
        %v353 = vrot.slane %v282, %v352
        %v354 = vlaneseq
        %v355 = vshrl.u32 %v354, 7
        %v356 = vsub.s32 5, %v355
        %v357 = vrot.slane %v282, %v356
        %v360 = vlaneseq
        %v361 = vshrl.u32 %v360, 7
        %v362 = vsub.s32 1, %v361
        %v363 = vrot.slane %v353, %v362
        %v364 = vlaneseq
        %v365 = vshrl.u32 %v364, 7
        %v366 = vsub.s32 1, %v365
        %v367 = vrot.slane %v357, %v366
        %v368 = vmul.f32 %v336, %v363
        %v369 = vmul.f32 %v336, %v367
        %v370 = vmul.f32 %v340, %v363
        %v371 = vmul.f32 %v340, %v367
        %v372 = vmul.f32 %v344, %v363
        %v373 = vmul.f32 %v344, %v367
        %v374 = vmul.f32 %v348, %v363
        %v375 = vmul.f32 %v348, %v367
        %v376 = vadd.f32 %v326, %v368
        %v377 = vadd.f32 %v327, %v369
        %v378 = vadd.f32 %v328, %v370
        %v379 = vadd.f32 %v329, %v371
        %v380 = vadd.f32 %v330, %v372
        %v381 = vadd.f32 %v331, %v373
        %v382 = vadd.f32 %v332, %v374
        %v383 = vadd.f32 %v333, %v375
        %384 = vset.pattern.permute.xlu0 2
        %385 = vperm.xlu0 %384, %v283
        %v386 = vpop.permute.xlu0 %385
        %388 = vset.pattern.permute.xlu0 2
        %389 = vperm.xlu0 %388, %v284
        %v390 = vpop.permute.xlu0 %389
        %392 = vset.pattern.permute.xlu0 2
        %393 = vperm.xlu0 %392, %v285
        %v394 = vpop.permute.xlu0 %393
        %396 = vset.pattern.permute.xlu0 2
        %397 = vperm.xlu0 %396, %v286
        %v398 = vpop.permute.xlu0 %397
        %v400 = vlaneseq
        %v401 = vshrl.u32 %v400, 7
        %v402 = vsub.s32 2, %v401
        %v403 = vrot.slane %v282, %v402
        %v404 = vlaneseq
        %v405 = vshrl.u32 %v404, 7
        %v406 = vsub.s32 6, %v405
        %v407 = vrot.slane %v282, %v406
        %v410 = vlaneseq
        %v411 = vshrl.u32 %v410, 7
        %v412 = vsub.s32 2, %v411
        %v413 = vrot.slane %v403, %v412
        %v414 = vlaneseq
        %v415 = vshrl.u32 %v414, 7
        %v416 = vsub.s32 2, %v415
        %v417 = vrot.slane %v407, %v416
        %v418 = vmul.f32 %v386, %v413
        %v419 = vmul.f32 %v386, %v417
        %v420 = vmul.f32 %v390, %v413
        %v421 = vmul.f32 %v390, %v417
        %v422 = vmul.f32 %v394, %v413
        %v423 = vmul.f32 %v394, %v417
        %v424 = vmul.f32 %v398, %v413
        %v425 = vmul.f32 %v398, %v417
        %v426 = vadd.f32 %v376, %v418
        %v427 = vadd.f32 %v377, %v419
        %v428 = vadd.f32 %v378, %v420
        %v429 = vadd.f32 %v379, %v421
        %v430 = vadd.f32 %v380, %v422
        %v431 = vadd.f32 %v381, %v423
        %v432 = vadd.f32 %v382, %v424
        %v433 = vadd.f32 %v383, %v425
        %v434 = vld [vmem:[%s2] sm:$0xff]
        %v435 = vld [vmem:[%s2 + $0x8] sm:$0xff]
        %v436 = vld [vmem:[%s2 + $0x10] sm:$0xff]
        %v437 = vld [vmem:[%s2 + $0x18] sm:$0xff]
        %439 = vset.pattern.permute.xlu0 0
        %440 = vperm.xlu0 %439, %v434
        %v441 = vpop.permute.xlu0 %440
        %444 = vset.pattern.permute.xlu0 0
        %445 = vperm.xlu0 %444, %v435
        %v446 = vpop.permute.xlu0 %445
        %449 = vset.pattern.permute.xlu0 0
        %450 = vperm.xlu0 %449, %v436
        %v451 = vpop.permute.xlu0 %450
        %454 = vset.pattern.permute.xlu0 0
        %455 = vperm.xlu0 %454, %v437
        %v456 = vpop.permute.xlu0 %455
        %v458 = vadd.f32 %v426, %v441
        %v459 = vadd.f32 %v427, %v441
        %v460 = vadd.f32 %v428, %v446
        %v461 = vadd.f32 %v429, %v446
        %v462 = vadd.f32 %v430, %v451
        %v463 = vadd.f32 %v431, %v451
        %v464 = vadd.f32 %v432, %v456
        %v465 = vadd.f32 %v433, %v456
        %vm466 = vcmp.gt.f32.partialorder %v458, 0.0
        %vm467 = vcmp.gt.f32.partialorder %v459, 0.0
        %vm468 = vcmp.gt.f32.partialorder %v460, 0.0
        %vm469 = vcmp.gt.f32.partialorder %v461, 0.0
        %vm470 = vcmp.gt.f32.partialorder %v462, 0.0
        %vm471 = vcmp.gt.f32.partialorder %v463, 0.0
        %vm472 = vcmp.gt.f32.partialorder %v464, 0.0
        %vm473 = vcmp.gt.f32.partialorder %v465, 0.0
        %v474 = vmul.f32 %v458, 1.442695
        %v475 = vpow.pop %v474
        %v476 = vmul.f32 %v459, 1.442695
        %v477 = vpow.pop %v476
        %v478 = vmul.f32 %v460, 1.442695
        %v479 = vpow.pop %v478
        %v480 = vmul.f32 %v461, 1.442695
        %v481 = vpow.pop %v480
        %v482 = vmul.f32 %v462, 1.442695
        %v483 = vpow.pop %v482
        %v484 = vmul.f32 %v463, 1.442695
        %v485 = vpow.pop %v484
        %v486 = vmul.f32 %v464, 1.442695
        %v487 = vpow.pop %v486
        %v488 = vmul.f32 %v465, 1.442695
        %v489 = vpow.pop %v488
        %v490 = vsub.f32 %v475, 1.0
        %v491 = vsub.f32 %v477, 1.0
        %v492 = vsub.f32 %v479, 1.0
        %v493 = vsub.f32 %v481, 1.0
        %v494 = vsub.f32 %v483, 1.0
        %v495 = vsub.f32 %v485, 1.0
        %v496 = vsub.f32 %v487, 1.0
        %v497 = vsub.f32 %v489, 1.0
        %v498 = vsel %vm466, %v458, %v490
        %v499 = vsel %vm467, %v459, %v491
        %v500 = vsel %vm468, %v460, %v492
        %v501 = vsel %vm469, %v461, %v493
        %v502 = vsel %vm470, %v462, %v494
        %v503 = vsel %vm471, %v463, %v495
        %v504 = vsel %vm472, %v464, %v496
        %v505 = vsel %vm473, %v465, %v497
        %v506 = vld [vmem:[%s3] sm:$0xff]
        %v507 = vld [vmem:[%s3 + $0x8] sm:$0xff]
        %v508 = vld [vmem:[%s3 + $0x10] sm:$0xff]
        %v509 = vld [vmem:[%s3 + $0x18] sm:$0xff]
        %v510 = vld [vmem:[%s4] sm:$0xff]
        %v511 = vld [vmem:[%s4 + $0x8] sm:$0xff]
        %v512 = vld [vmem:[%s4 + $0x10] sm:$0xff]
        %v513 = vld [vmem:[%s4 + $0x18] sm:$0xff]
        %515 = vset.pattern.permute.xlu0 0
        %516 = vperm.xlu0 %515, %v510
        %v517 = vpop.permute.xlu0 %516
        %520 = vset.pattern.permute.xlu0 0
        %521 = vperm.xlu0 %520, %v511
        %v522 = vpop.permute.xlu0 %521
        %525 = vset.pattern.permute.xlu0 0
        %526 = vperm.xlu0 %525, %v512
        %v527 = vpop.permute.xlu0 %526
        %530 = vset.pattern.permute.xlu0 0
        %531 = vperm.xlu0 %530, %v513
        %v532 = vpop.permute.xlu0 %531
        %vm534 = vcmask 261120
        %v536 = vsel %vm534, %v506, 0
        %v539 = vsel %vm534, %v507, 0
        %v542 = vsel %vm534, %v508, 0
        %v545 = vsel %vm534, %v509, 0
        %547 = vmatprep.subr.mxu0 %v499
        %548 = vmatpush1.msra.mxu0 %v498
        %549 = vmatprep.subr.mxu0 %v501
        %550 = vmatpush1.msra.mxu0 %v500
        %551 = vmatprep.subr.mxu0 %v503
        %552 = vmatpush1.msra.mxu0 %v502
        %553 = vmatprep.subr.mxu0 %v505
        %554 = vmatpush1.msra.mxu0 %v504
        %555 = vmatprep.subr.mxu0 0.0
        %556 = vmatpush1.msra.mxu0 0.0
        %557 = vmatprep.subr.mxu0 0.0
        %558 = vmatpush1.msra.mxu0 0.0
        %559 = vmatprep.subr.mxu0 0.0
        %560 = vmatpush1.msra.mxu0 0.0
        %561 = vmatprep.subr.mxu0 0.0
        %562 = vmatpush1.msra.mxu0 0.0
        %563 = vmatprep.subr.mxu0 0.0
        %564 = vmatpush1.msra.mxu0 0.0
        %565 = vmatprep.subr.mxu0 0.0
        %566 = vmatpush1.msra.mxu0 0.0
        %567 = vmatprep.subr.mxu0 0.0
        %568 = vmatpush1.msra.mxu0 0.0
        %569 = vmatprep.subr.mxu0 0.0
        %570 = vmatpush1.msra.mxu0 0.0
        %571 = vmatprep.subr.mxu0 0.0
        %572 = vmatpush1.msra.mxu0 0.0
        %573 = vmatprep.subr.mxu0 0.0
        %574 = vmatpush1.msra.mxu0 0.0
        %575 = vmatprep.subr.mxu0 0.0
        %576 = vmatpush1.msra.mxu0 0.0
        %577 = vmatprep.subr.mxu0 0.0
        %578 = vmatpush1.msra.mxu0 0.0
        %579 = vmatprep.subr.mxu0 0.0
        %580 = vmatpush1.msra.mxu0 0.0
        %581 = vmatprep.subr.mxu0 0.0
        %582 = vmatpush1.msra.mxu0 0.0
        %583 = vmatprep.subr.mxu0 0.0
        %584 = vmatpush1.msra.mxu0 0.0
        %585 = vmatprep.subr.mxu0 0.0
        %586 = vmatpush1.msra.mxu0 0.0
        %587 = vmatprep.subr.mxu0 0.0
        %588 = vmatpush1.msra.mxu0 0.0
        %589 = vmatprep.subr.mxu0 0.0
        %590 = vmatpush1.msra.mxu0 0.0
        %591 = vmatprep.subr.mxu0 0.0
        %592 = vmatpush1.msra.mxu0 0.0
        %593 = vmatprep.subr.mxu0 0.0
        %594 = vmatpush1.msra.mxu0 0.0
        %595 = vmatprep.subr.mxu0 0.0
        %596 = vmatpush1.msra.mxu0 0.0
        %597 = vmatprep.subr.mxu0 0.0
        %598 = vmatpush1.msra.mxu0 0.0
        %599 = vmatprep.subr.mxu0 0.0
        %600 = vmatpush1.msra.mxu0 0.0
        %601 = vmatprep.subr.mxu0 0.0
        %602 = vmatpush1.msra.mxu0 0.0
        %603 = vmatprep.subr.mxu0 0.0
        %604 = vmatpush1.msra.mxu0 0.0
        %605 = vmatprep.subr.mxu0 0.0
        %606 = vmatpush1.msra.mxu0 0.0
        %607 = vmatprep.subr.mxu0 0.0
        %608 = vmatpush1.msra.mxu0 0.0
        %609 = vmatprep.subr.mxu0 0.0
        %610 = vmatpush1.msra.mxu0 0.0
        %611 = vmatprep.mubr.f32.mxu0 0.0
        %612 = vmatmul.mubr.f32.gmra.mrb[0].mxu0 %v536
        %v613 = vpop.f32.mrb[0].mxu0
        %v614 = vadd.f32 %v517, %v613
        %v615 = vpop.f32.mrb[0].mxu0
        %v616 = vadd.f32 %v517, %v615
        %617 = vmatprep.mubr.f32.mxu0 0.0
        %618 = vmatmul.mubr.f32.gmra.mrb[0].mxu0 %v539
        %v619 = vpop.f32.mrb[0].mxu0
        %v620 = vadd.f32 %v522, %v619
        %v621 = vpop.f32.mrb[0].mxu0
        %v622 = vadd.f32 %v522, %v621
        %623 = vmatprep.mubr.f32.mxu0 0.0
        %624 = vmatmul.mubr.f32.gmra.mrb[0].mxu0 %v542
        %v625 = vpop.f32.mrb[0].mxu0
        %v626 = vadd.f32 %v527, %v625
        %v627 = vpop.f32.mrb[0].mxu0
        %v628 = vadd.f32 %v527, %v627
        %629 = vmatprep.mubr.f32.mxu0 0.0
        %630 = vmatmul.mubr.f32.gmra.mrb[0].mxu0 %v545
        %v631 = vpop.f32.mrb[0].mxu0
        %v632 = vadd.f32 %v532, %v631
        %v633 = vpop.f32.mrb[0].mxu0
        %v634 = vadd.f32 %v532, %v633
        %635 = vdwg.mxu0
        %vm636 = vcmp.gt.f32.partialorder %v614, 0.0
        %vm637 = vcmp.gt.f32.partialorder %v616, 0.0
        %vm638 = vcmp.gt.f32.partialorder %v620, 0.0
        %vm639 = vcmp.gt.f32.partialorder %v622, 0.0
        %vm640 = vcmp.gt.f32.partialorder %v626, 0.0
        %vm641 = vcmp.gt.f32.partialorder %v628, 0.0
        %vm642 = vcmp.gt.f32.partialorder %v632, 0.0
        %vm643 = vcmp.gt.f32.partialorder %v634, 0.0
        %v644 = vmul.f32 %v614, 1.442695
        %v645 = vpow.pop %v644
        %v646 = vmul.f32 %v616, 1.442695
        %v647 = vpow.pop %v646
        %v648 = vmul.f32 %v620, 1.442695
        %v649 = vpow.pop %v648
        %v650 = vmul.f32 %v622, 1.442695
        %v651 = vpow.pop %v650
        %v652 = vmul.f32 %v626, 1.442695
        %v653 = vpow.pop %v652
        %v654 = vmul.f32 %v628, 1.442695
        %v655 = vpow.pop %v654
        %v656 = vmul.f32 %v632, 1.442695
        %v657 = vpow.pop %v656
        %v658 = vmul.f32 %v634, 1.442695
        %v659 = vpow.pop %v658
        %v660 = vsub.f32 %v645, 1.0
        %v661 = vsub.f32 %v647, 1.0
        %v662 = vsub.f32 %v649, 1.0
        %v663 = vsub.f32 %v651, 1.0
        %v664 = vsub.f32 %v653, 1.0
        %v665 = vsub.f32 %v655, 1.0
        %v666 = vsub.f32 %v657, 1.0
        %v667 = vsub.f32 %v659, 1.0
        %v668 = vsel %vm636, %v614, %v660
        %v669 = vsel %vm637, %v616, %v661
        %v670 = vsel %vm638, %v620, %v662
        %v671 = vsel %vm639, %v622, %v663
        %v672 = vsel %vm640, %v626, %v664
        %v673 = vsel %vm641, %v628, %v665
        %v674 = vsel %vm642, %v632, %v666
        %v675 = vsel %vm643, %v634, %v667
        %v676 = vld [vmem:[%s5] sm:$0x1]
        %v677 = vld [vmem:[#allocation2] sm:$0x1]
        %679 = vset.pattern.permute.xlu0 0
        %680 = vperm.xlu0 %679, %v677
        %v681 = vpop.permute.xlu0 %680
        %v683 = vlaneseq
        %v684 = vshrl.u32 %v683, 7
        %v685 = vsub.s32 0, %v684
        %v686 = vrot.slane %v681, %v685
        %v688 = vsel %vm534, %v676, 0
        %690 = vmatprep.subr.mxu0 %v669
        %691 = vmatpush1.msra.mxu0 %v668
        %692 = vmatprep.subr.mxu0 %v671
        %693 = vmatpush1.msra.mxu0 %v670
        %694 = vmatprep.subr.mxu0 %v673
        %695 = vmatpush1.msra.mxu0 %v672
        %696 = vmatprep.subr.mxu0 %v675
        %697 = vmatpush1.msra.mxu0 %v674
        %698 = vmatprep.subr.mxu0 0.0
        %699 = vmatpush1.msra.mxu0 0.0
        %700 = vmatprep.subr.mxu0 0.0
        %701 = vmatpush1.msra.mxu0 0.0
        %702 = vmatprep.subr.mxu0 0.0
        %703 = vmatpush1.msra.mxu0 0.0
        %704 = vmatprep.subr.mxu0 0.0
        %705 = vmatpush1.msra.mxu0 0.0
        %706 = vmatprep.subr.mxu0 0.0
        %707 = vmatpush1.msra.mxu0 0.0
        %708 = vmatprep.subr.mxu0 0.0
        %709 = vmatpush1.msra.mxu0 0.0
        %710 = vmatprep.subr.mxu0 0.0
        %711 = vmatpush1.msra.mxu0 0.0
        %712 = vmatprep.subr.mxu0 0.0
        %713 = vmatpush1.msra.mxu0 0.0
        %714 = vmatprep.subr.mxu0 0.0
        %715 = vmatpush1.msra.mxu0 0.0
        %716 = vmatprep.subr.mxu0 0.0
        %717 = vmatpush1.msra.mxu0 0.0
        %718 = vmatprep.subr.mxu0 0.0
        %719 = vmatpush1.msra.mxu0 0.0
        %720 = vmatprep.subr.mxu0 0.0
        %721 = vmatpush1.msra.mxu0 0.0
        %722 = vmatprep.subr.mxu0 0.0
        %723 = vmatpush1.msra.mxu0 0.0
        %724 = vmatprep.subr.mxu0 0.0
        %725 = vmatpush1.msra.mxu0 0.0
        %726 = vmatprep.subr.mxu0 0.0
        %727 = vmatpush1.msra.mxu0 0.0
        %728 = vmatprep.subr.mxu0 0.0
        %729 = vmatpush1.msra.mxu0 0.0
        %730 = vmatprep.subr.mxu0 0.0
        %731 = vmatpush1.msra.mxu0 0.0
        %732 = vmatprep.subr.mxu0 0.0
        %733 = vmatpush1.msra.mxu0 0.0
        %734 = vmatprep.subr.mxu0 0.0
        %735 = vmatpush1.msra.mxu0 0.0
        %736 = vmatprep.subr.mxu0 0.0
        %737 = vmatpush1.msra.mxu0 0.0
        %738 = vmatprep.subr.mxu0 0.0
        %739 = vmatpush1.msra.mxu0 0.0
        %740 = vmatprep.subr.mxu0 0.0
        %741 = vmatpush1.msra.mxu0 0.0
        %742 = vmatprep.subr.mxu0 0.0
        %743 = vmatpush1.msra.mxu0 0.0
        %744 = vmatprep.subr.mxu0 0.0
        %745 = vmatpush1.msra.mxu0 0.0
        %746 = vmatprep.subr.mxu0 0.0
        %747 = vmatpush1.msra.mxu0 0.0
        %748 = vmatprep.subr.mxu0 0.0
        %749 = vmatpush1.msra.mxu0 0.0
        %750 = vmatprep.subr.mxu0 0.0
        %751 = vmatpush1.msra.mxu0 0.0
        %752 = vmatprep.subr.mxu0 0.0
        %753 = vmatpush1.msra.mxu0 0.0
        %754 = vmatprep.mubr.f32.mxu0 0.0
        %755 = vmatmul.mubr.f32.gmra.mrb[0].mxu0 %v688
        %v756 = vpop.f32.mrb[0].mxu0
        %v757 = vadd.f32 %v686, %v756
        %v758 = vpop.f32.mrb[0].mxu0
        %v759 = vadd.f32 %v686, %v758
        %760 = vdwg.mxu0
        %v763 = vcombine.low %v757, %v759
        %v765 = vunpack.c.l.s4 1966171168
        %v766 = vunpack.c.0.s8 %v765
        %v767 = vlaneseq
        %v768 = vshrl.u32 %v767, 7
        %v769 = vsub.s32 %v766, %v768
        %v770 = vrot.slane %v763, %v769
        %v772 = vunpack.c.l.s4 1966171168
        %v773 = vunpack.c.0.s8 %v772
        %v774 = vlaneseq
        %v775 = vshrl.u32 %v774, 7
        %v776 = vsub.s32 %v773, %v775
        %v777 = vrot.slane %v770, %v776
        %v779 = vlaneseq
        %vm780 = vcmp.ge.s32.totalorder %v779, 0
        %vm781 = vcmp.lt.s32.totalorder %v779, 256
        %vm782 = vmand %vm780, %vm781
        %783 = vst.msk [vmem:[%s274] sm:$0x3] %vm782, %v777
        %s784 = sand.u32 %s183, 1
        %s785 = scalar_lea.sflag [#allocation4], %s784
        %s786 = sand.u32 %s183, 1
        %s787 = smul.addr %s786, 2
        %s788 = scalar_lea.vmem [#allocation3], %s787
        // Predicated region
        $region49: #{conditional_general_net_forward.1} parent=47 // pred_check
          %p789 = pneg %p193
        $region50: #{conditional_general_net_forward.1} parent=47 // pred_check_branch
          %791 = sbr.rel (%p789) target = $region52
        $region51: #{conditional_general_net_forward.1} parent=47 // pred_region
          %s792 = smul.u32 2, %s23
          %s794 = ssub.s32 32, 32
          %795 = vsyncadd %s785, %s794
          %s796 = smul.addr %s792, 16
          %s797 = scalar_lea.hbm %s7, %s796
          %s799 = sshll.u32 %s788, 4
          %s800 = int_to_ptr.vmem [resolvable:$true] %s799
          %802 = dma.vmem_to_hbm [thread:$0]  %s800, 32, %s797, %s785
        $region52: #{conditional_general_net_forward.1} parent=47 // pred_fallthru
          _
      $region48: #{conditional_general_net_forward.1} parent=5 // pred_fallthru
        _
      %p803 = scmp.le.s32.totalorder 2, %s18
      // Predicated region
      $region53: #{conditional_general_net_forward.1} parent=5 // pred_check
        %p804 = pneg %p803
      $region54: #{conditional_general_net_forward.1} parent=5 // pred_check_branch
        %806 = sbr.rel (%p804) target = $region56
      $region55: #{conditional_general_net_forward.1} parent=5 // pred_region
        %s807 = ssub.s32 %s18, 2
        // Predicated region
        $region57: #{conditional_general_net_forward.1} parent=55 // pred_check
          %p808 = pneg %p199
        $region58: #{conditional_general_net_forward.1} parent=55 // pred_check_branch
          %810 = sbr.rel (%p808) target = $region60
        $region59: #{conditional_general_net_forward.1} parent=55 // pred_region
          %s811 = sand.u32 %s184, 1
          %s812 = scalar_lea.sflag [#allocation4], %s811
          %s813 = sand.u32 %s184, 1
          %s814 = smul.addr %s813, 2
          %s815 = scalar_lea.vmem [#allocation3], %s814
          %816 = dma.done %s812, 32
        $region60: #{conditional_general_net_forward.1} parent=55 // pred_fallthru
          _
      $region56: #{conditional_general_net_forward.1} parent=5 // pred_fallthru
        _
    $region6: #{conditional_general_net_forward.1} parent=1 // loop_footer
      %s22 = sadd.s32 1, %s18
    $region7: #{conditional_general_net_forward.1} parent=1 // loop_footer_branch
      %17 = sbr.rel target = $region3
    $region8: #{conditional_general_net_forward.1} parent=1 // loop_exit
      _
    %817 = vsyncpa [#allocation4], 1
    %s818 = scalar_lea.sflag [#allocation4], 1
    %819 = vsyncpa %s818, 1

</llo_original>
